<compile_context>
chip_gen: v6e
topology: v6e:2x2x1
jax: 0.10.0
libtpu: 0.0.40
codegen_flags: <defaults>
</compile_context>

<pallas_src>
import jax
import jax.numpy as jnp
import numpy as np
from jax.experimental import pallas as pl
from jax.experimental.pallas import tpu as pltpu

VOCAB = 32          # fixed by nn.Embedding(32, 128) in the reference module
HIDDEN = 128        # hidden_size must equal 128 to be addable to position embeddings
EPS = 1e-12         # matches the PyTorch LayerNorm


def embeddings_kernel(x_ref, pid_ref, table_ref, gamma_ref, beta_ref, o_ref):
    # x_ref:     (TILE_R, H) native dtype -- pre-embedded features (rows = flat B*S)
    # pid_ref:   (TILE_R, 1) int32        -- position ids, one per row (sublane dim)
    # table_ref: (VOCAB, H)  float32      -- position embedding table (resident)
    # gamma/beta:(1, H)      float32      -- LayerNorm affine params
    # o_ref:     (TILE_R, H) float32

    # Cast in-kernel (no extra HBM pass in the wrapper); emulate torch `.long()` by
    # truncating toward zero.
    x = jnp.trunc(x_ref[...].astype(jnp.float32))               # (TILE_R, H)

    pid = pid_ref[...]                                           # (TILE_R, 1) int32
    tile_r = pid.shape[0]

    # Embedding lookup as one-hot @ table (exact: one nonzero per row) -> MXU.
    # The reference's `position_ids + 1` is folded into the compile-time iota:
    #   (pid + 1) == iota  <=>  pid == iota - 1
    # NOTE: out-of-range ids (pid + 1 >= VOCAB or < 0) silently yield a zero position
    # embedding here (PyTorch nn.Embedding would raise instead).
    shifted_iota = jax.lax.broadcasted_iota(jnp.int32, (tile_r, VOCAB), 1) - 1
    one_hot = (pid == shifted_iota).astype(jnp.float32)          # (TILE_R, VOCAB)
    pos_emb = jnp.dot(one_hot, table_ref[...],
                      preferred_element_type=jnp.float32)        # (TILE_R, H)

    emb = x + pos_emb

    # LayerNorm over last dim: centered two-pass variance (matches torch; avoids the
    # E[x^2] - mean^2 cancellation which can go negative -> NaN), rsqrt on the EUP.
    inv_h = jnp.float32(1.0 / emb.shape[-1])
    mean = jnp.sum(emb, axis=-1, keepdims=True) * inv_h
    centered = emb - mean
    var = jnp.sum(centered * centered, axis=-1, keepdims=True) * inv_h
    normed = centered * jax.lax.rsqrt(var + EPS)

    o_ref[...] = gamma_ref[...] * normed + beta_ref[...]         # (1,H) broadcasts over rows


def embeddings_forward(embedded_input_ids, position_ids, table, gamma, beta, *, tile_r=2048):
    B, S, H = embedded_input_ids.shape
    assert H == HIDDEN, "hidden size must be 128 to match nn.Embedding(32, 128)"
    R = B * S

    # Keep native input dtype (cast happens in-kernel); reshapes are layout-free.
    x = embedded_input_ids.reshape(R, H)
    pid = position_ids.reshape(R, 1)
    if pid.dtype != jnp.int32:
        pid = pid.astype(jnp.int32)          # tiny (4 B/row) compared to the 512 B/row slab

    # Row tile: multiple of 8 (sublane constraint), big enough to approach the HBM
    # roofline, but capped so the grid has at least 2 steps (v7x: both TensorCores busy).
    # VMEM budget at tile=2048 (f32 in): x 1 MiB + pid(lane-padded) 1 MiB + out 1 MiB,
    # double-buffered ~6 MiB -> fits the 16 MiB v5e scoped-VMEM default with headroom.
    half_rows = (((R + 1) // 2) + 7) // 8 * 8
    tile = max(8, min(tile_r, half_rows))
    grid = pl.cdiv(R, tile)                   # ragged last block is masked by Pallas

    out = pl.pallas_call(
        embeddings_kernel,
        out_shape=jax.ShapeDtypeStruct((R, H), jnp.float32),
        grid_spec=pltpu.PrefetchScalarGridSpec(
            num_scalar_prefetch=0,
            grid=(grid,),
            in_specs=[
                pl.BlockSpec((tile, H), lambda r: (r, 0)),     # embedded inputs (rows)
                pl.BlockSpec((tile, 1), lambda r: (r, 0)),     # position ids (rows)
                pl.BlockSpec((VOCAB, H), lambda r: (0, 0)),    # embedding table (resident)
                pl.BlockSpec((1, H), lambda r: (0, 0)),        # gamma
                pl.BlockSpec((1, H), lambda r: (0, 0)),        # beta
            ],
            out_specs=pl.BlockSpec((tile, H), lambda r: (r, 0)),
        ),
        compiler_params=pltpu.CompilerParams(
            dimension_semantics=("parallel",),
        ),
    )(x, pid, table.astype(jnp.float32),
      gamma.reshape(1, H).astype(jnp.float32),
      beta.reshape(1, H).astype(jnp.float32))

    return out.reshape(B, S, H)


def embeddings_reference(embedded_input_ids, position_ids, table, gamma, beta):
    x = jnp.trunc(embedded_input_ids.astype(jnp.float32))
    pid = position_ids.astype(jnp.int32) + 1
    pos_emb = jnp.take(table, pid, axis=0)
    emb = x + pos_emb
    u = jnp.mean(emb, axis=-1, keepdims=True)
    var = jnp.mean((emb - u) ** 2, axis=-1, keepdims=True)
    normed = (emb - u) / jnp.sqrt(var + EPS)
    return gamma * normed + beta


if __name__ == "__main__":
    B, S, H = 2, 8, HIDDEN

    key = jax.random.PRNGKey(0)
    k_x, k_pid, k_tab = jax.random.split(key, 3)

    # deterministic synthetic inputs / parameters
    embedded_input_ids = jax.random.normal(k_x, (B, S, H), jnp.float32) * 3.0
    position_ids = jax.random.randint(k_pid, (B, S), 0, VOCAB - 1, jnp.int32)  # +1 stays < 32
    table = jax.random.normal(k_tab, (VOCAB, H), jnp.float32)                  # nn.Embedding(32,128)
    gamma = jnp.ones((H,), jnp.float32)                                        # LayerNorm.gamma
    beta = jnp.zeros((H,), jnp.float32)                                        # LayerNorm.beta

    out = embeddings_forward(embedded_input_ids, position_ids, table, gamma, beta)
    jax.block_until_ready(out)

    ref = embeddings_reference(embedded_input_ids, position_ids, table, gamma, beta)
    np.testing.assert_allclose(np.asarray(out), np.asarray(ref), rtol=1e-4, atol=1e-4)

    print("KERNEL_OK")
</pallas_src>

<mosaic_0001>
module attributes {stable_mosaic.version = 11 : i64} {
  func.func @embeddings_kernel(%arg0: i32, %arg1: memref<8x128xf32, #tpu.memory_space<vmem>>, %arg2: memref<8x1xi32, #tpu.memory_space<vmem>>, %arg3: memref<32x128xf32, #tpu.memory_space<vmem>>, %arg4: memref<1x128xf32, #tpu.memory_space<vmem>>, %arg5: memref<1x128xf32, #tpu.memory_space<vmem>>, %arg6: memref<8x128xf32, #tpu.memory_space<vmem>>) attributes {dimension_semantics = [#tpu.dimension_semantics<parallel>], iteration_bounds = array<i64: 2>, scalar_prefetch = 0 : i64, scratch_operands = 0 : i64, tpu.core_type = #tpu.core_type<tc>, window_params = [{transform_indices = @transform_0, window_bounds = array<i64: 8, 128>}, {transform_indices = @transform_1, window_bounds = array<i64: 8, 1>}, {pipeline_mode = #tpu.pipeline_mode<synchronous>, transform_indices = @transform_2, window_bounds = array<i64: 32, 128>}, {pipeline_mode = #tpu.pipeline_mode<synchronous>, transform_indices = @transform_3, window_bounds = array<i64: 1, 128>}, {pipeline_mode = #tpu.pipeline_mode<synchronous>, transform_indices = @transform_4, window_bounds = array<i64: 1, 128>}, {transform_indices = @transform_5, window_bounds = array<i64: 8, 128>}]} {
    %c0 = arith.constant 0 : index
    %c0_0 = arith.constant 0 : index
    %0 = vector.load %arg1[%c0, %c0_0] : memref<8x128xf32, #tpu.memory_space<vmem>>, vector<8x128xf32>
    %cst = arith.constant 0.000000e+00 : f32
    %1 = vector.broadcast %cst : f32 to vector<8x128xf32>
    %2 = arith.cmpf olt, %0, %1 : vector<8x128xf32>
    %3 = math.ceil %0 : vector<8x128xf32>
    %4 = math.floor %0 : vector<8x128xf32>
    %5 = arith.select %2, %3, %4 : vector<8x128xi1>, vector<8x128xf32>
    %c0_1 = arith.constant 0 : index
    %c0_2 = arith.constant 0 : index
    %6 = vector.load %arg2[%c0_1, %c0_2] : memref<8x1xi32, #tpu.memory_space<vmem>>, vector<8x1xi32>
    %7 = tpu.iota {dimensions = array<i32: 1>} : vector<8x32xi32>
    %c1_i32 = arith.constant 1 : i32
    %8 = vector.broadcast %c1_i32 : i32 to vector<8x32xi32>
    %9 = arith.subi %7, %8 : vector<8x32xi32>
    %10 = vector.broadcast %6 : vector<8x1xi32> to vector<8x32xi32>
    %11 = arith.cmpi eq, %10, %9 : vector<8x32xi32>
    %12 = arith.extui %11 : vector<8x32xi1> to vector<8x32xi32>
    %13 = arith.sitofp %12 : vector<8x32xi32> to vector<8x32xf32>
    %c0_3 = arith.constant 0 : index
    %c0_4 = arith.constant 0 : index
    %14 = vector.load %arg3[%c0_3, %c0_4] : memref<32x128xf32, #tpu.memory_space<vmem>>, vector<32x128xf32>
    %cst_5 = arith.constant dense<0.000000e+00> : vector<8x128xf32>
    %15 = tpu.matmul %13, %14, %cst_5 {dimension_numbers = #tpu.dot_dimension_numbers<[1], [0], [0], [1], [0, 0, 1, 1], [], []>} : vector<8x32xf32>, vector<32x128xf32>, vector<8x128xf32> -> vector<8x128xf32>
    %16 = arith.addf %5, %15 : vector<8x128xf32>
    %cst_6 = arith.constant dense<0.000000e+00> : vector<8xf32>
    %17 = vector.multi_reduction <add>, %16, %cst_6 [1] : vector<8x128xf32> to vector<8xf32>
    %18 = vector.shape_cast %17 : vector<8xf32> to vector<8x1xf32>
    %cst_7 = arith.constant 7.812500e-03 : f32
    %19 = vector.broadcast %cst_7 : f32 to vector<8x1xf32>
    %20 = arith.mulf %18, %19 : vector<8x1xf32>
    %21 = vector.broadcast %20 : vector<8x1xf32> to vector<8x128xf32>
    %22 = arith.subf %16, %21 : vector<8x128xf32>
    %23 = arith.mulf %22, %22 : vector<8x128xf32>
    %cst_8 = arith.constant dense<0.000000e+00> : vector<8xf32>
    %24 = vector.multi_reduction <add>, %23, %cst_8 [1] : vector<8x128xf32> to vector<8xf32>
    %25 = vector.shape_cast %24 : vector<8xf32> to vector<8x1xf32>
    %cst_9 = arith.constant 7.812500e-03 : f32
    %26 = vector.broadcast %cst_9 : f32 to vector<8x1xf32>
    %27 = arith.mulf %25, %26 : vector<8x1xf32>
    %cst_10 = arith.constant 9.99999996E-13 : f32
    %28 = vector.broadcast %cst_10 : f32 to vector<8x1xf32>
    %29 = arith.addf %27, %28 : vector<8x1xf32>
    %30 = math.rsqrt %29 : vector<8x1xf32>
    %31 = vector.broadcast %30 : vector<8x1xf32> to vector<8x128xf32>
    %32 = arith.mulf %22, %31 : vector<8x128xf32>
    %c0_11 = arith.constant 0 : index
    %c0_12 = arith.constant 0 : index
    %33 = vector.load %arg4[%c0_11, %c0_12] : memref<1x128xf32, #tpu.memory_space<vmem>>, vector<1x128xf32>
    %34 = vector.broadcast %33 : vector<1x128xf32> to vector<8x128xf32>
    %35 = arith.mulf %34, %32 : vector<8x128xf32>
    %c0_13 = arith.constant 0 : index
    %c0_14 = arith.constant 0 : index
    %36 = vector.load %arg5[%c0_13, %c0_14] : memref<1x128xf32, #tpu.memory_space<vmem>>, vector<1x128xf32>
    %37 = vector.broadcast %36 : vector<1x128xf32> to vector<8x128xf32>
    %38 = arith.addf %35, %37 : vector<8x128xf32>
    %c0_15 = arith.constant 0 : index
    %c0_16 = arith.constant 0 : index
    %39 = vector.load %arg6[%c0_15, %c0_16] : memref<8x128xf32, #tpu.memory_space<vmem>>, vector<8x128xf32>
    tpu.vector_store %arg6[%c0_15, %c0_16], %38 {strides = array<i32>} : memref<8x128xf32, #tpu.memory_space<vmem>>, vector<8x128xf32>,
    return
  }
  func.func @transform_0(%arg0: i32) -> (i32, i32) {
    %c0_i32 = arith.constant 0 : i32
    %c0_i32_0 = arith.constant 0 : i32
    return %arg0, %c0_i32 : i32, i32
  }
  func.func @transform_1(%arg0: i32) -> (i32, i32) {
    %c0_i32 = arith.constant 0 : i32
    %c0_i32_0 = arith.constant 0 : i32
    return %arg0, %c0_i32 : i32, i32
  }
  func.func @transform_2(%arg0: i32) -> (i32, i32) {
    %c0_i32 = arith.constant 0 : i32
    %c0_i32_0 = arith.constant 0 : i32
    %c0_i32_1 = arith.constant 0 : i32
    return %c0_i32, %c0_i32_0 : i32, i32
  }
  func.func @transform_3(%arg0: i32) -> (i32, i32) {
    %c0_i32 = arith.constant 0 : i32
    %c0_i32_0 = arith.constant 0 : i32
    %c0_i32_1 = arith.constant 0 : i32
    return %c0_i32, %c0_i32_0 : i32, i32
  }
  func.func @transform_4(%arg0: i32) -> (i32, i32) {
    %c0_i32 = arith.constant 0 : i32
    %c0_i32_0 = arith.constant 0 : i32
    %c0_i32_1 = arith.constant 0 : i32
    return %c0_i32, %c0_i32_0 : i32, i32
  }
  func.func @transform_5(%arg0: i32) -> (i32, i32) {
    %c0_i32 = arith.constant 0 : i32
    %c0_i32_0 = arith.constant 0 : i32
    return %arg0, %c0_i32 : i32, i32
  }
}

</mosaic_0001>

<llo_original>
// kernel: tpu_custom_call.1
$region0: #{tpu_custom_call.1}
  #allocation0 [shape = 'u32[]', space=smem, size = 0x4, offset = 0x4, fixed_abs, tag = 'smem constant byte address 0x4 - core index']
  #allocation1 [shape = 'u32[144,128]{1,0:T(1,128)}', space=vmem, size = 0x12000, scoped, tag = 'internal scratch']
  %s0 = inlined_call_operand.vmem [shape: f32[16,128], index: 0, kind: input, shape index: {}]
  %s1 = inlined_call_operand.vmem [shape: s32[16,1], index: 1, kind: input, shape index: {}]
  %s2 = inlined_call_operand.hbm [shape: f32[32,128], index: 2, kind: input, shape index: {}]
  %s3 = inlined_call_operand.vmem [shape: f32[1,128], index: 3, kind: input, shape index: {}]
  %s4 = inlined_call_operand.vmem [shape: f32[1,128], index: 4, kind: input, shape index: {}]
  %s5 = inlined_call_operand.hbm [shape: f32[16,128], index: 5, kind: output, shape index: {}]
  %s6 = sld [smem:[#allocation0]]
  $region57: #{tpu_custom_call.1} parent=0
    _
  %s8 = ssub.s32 1, %s6
  %s9 = scalar_select 0, %s8, %s6
  $region1: #{tpu_custom_call.1} parent=0
    #allocation2 [shape = 'u8[16384]{0}', space=vmem, size = 0x4000, scoped, tag = 'input window, operand 2, single buffered']
    #allocation3 [shape = 's32[2]{0}', space=sflag, size = 0x8, scoped, tag = 'scoped memory for tpu_custom_call.1']
    #allocation4 [shape = 's32[2]{0}', space=sflag, size = 0x8, scoped, tag = 'scoped memory for tpu_custom_call.1']
    #allocation5 [shape = 'u8[8192]{0}', space=vmem, size = 0x2000, scoped, tag = 'output window, operand 0']
    %10 = vsyncpa [#allocation3], 0
    %11 = vsyncpa [#allocation4], 0
    %s12 = scalar_lea.sflag [#allocation4], 1
    %13 = vsyncpa %s12, 0
    loop: start=0, step=1, limit=4
    $region2: #{tpu_custom_call.1} parent=1 // loop_pre_header
      _
    $region3: #{tpu_custom_call.1} parent=1 // loop_header
      %s15 = sphi 0, %s19
      %p16 = scmp.ge.s32.totalorder %s15, 4
      %s25 = sphi 0, %s27
      %s28 = sphi 0, %s25
      %s29 = sphi 0, %s28
      %s45 = sphi 0, %s29
      %s51 = sphi 0, %s53
      %s54 = sphi 0, %s51
      %s55 = sphi 0, %s54
      %s71 = sphi 0, %s55
      %s75 = sphi 0, %s75
      %s77 = sphi 0, %s75
      %s78 = sphi 0, %s77
      %s92 = sphi 0, %s78
      %s96 = sphi 0, %s96
      %s98 = sphi 0, %s96
      %s99 = sphi 0, %s98
      %s113 = sphi 0, %s99
      %s117 = sphi 0, %s117
      %s119 = sphi 0, %s117
      %s120 = sphi 0, %s119
      %s134 = sphi 0, %s120
      %s140 = sphi 0, %s142
      %s143 = sphi 0, %s140
      %s144 = sphi 0, %s143
      %s160 = sphi 0, %s144
    $region4: #{tpu_custom_call.1} parent=1 // loop_header_branch
      %18 = sbr.rel (%p16) target = $region8
    $region5: #{tpu_custom_call.1} parent=1 // loop_body
      %s20 = ssub.s32 %s15, 1
      %s21 = ssub.s32 %s15, 2
      %s22 = sadd.s32 %s15, 1
      %s23 = ssub.s32 %s15, %s22
      %p24 = scmp.eq.s32.totalorder %s23, 0
      %s26 = sadd.s32 %s25, 1
      %s27 = scalar_select %p24, %s25, %s26
      %p30 = pneg %p24
      %p31 = scmp.eq.s32.totalorder %s15, 1
      %p32 = por %p30, %p31
      %p33 = scmp.ne.s32.totalorder %s25, %s28
      %p34 = scmp.eq.s32.totalorder %s15, 0
      %p35 = por %p33, %p34
      %p36 = scmp.ne.s32.totalorder %s25, %s28
      %p37 = scmp.eq.s32.totalorder %s20, 1
      %p38 = por %p36, %p37
      %p39 = scmp.ne.s32.totalorder %s28, %s29
      %p40 = scmp.eq.s32.totalorder %s20, 0
      %p41 = por %p39, %p40
      %p42 = scmp.ne.s32.totalorder %s28, %s29
      %p43 = scmp.eq.s32.totalorder %s21, 1
      %p44 = por %p42, %p43
      %p46 = scmp.ne.s32.totalorder %s29, %s45
      %p47 = scmp.eq.s32.totalorder %s21, 0
      %p48 = por %p46, %p47
      %s49 = ssub.s32 %s15, %s22
      %p50 = scmp.eq.s32.totalorder %s49, 0
      %s52 = sadd.s32 %s51, 1
      %s53 = scalar_select %p50, %s51, %s52
      %p56 = pneg %p50
      %p57 = scmp.eq.s32.totalorder %s15, 1
      %p58 = por %p56, %p57
      %p59 = scmp.ne.s32.totalorder %s51, %s54
      %p60 = scmp.eq.s32.totalorder %s15, 0
      %p61 = por %p59, %p60
      %p62 = scmp.ne.s32.totalorder %s51, %s54
      %p63 = scmp.eq.s32.totalorder %s20, 1
      %p64 = por %p62, %p63
      %p65 = scmp.ne.s32.totalorder %s54, %s55
      %p66 = scmp.eq.s32.totalorder %s20, 0
      %p67 = por %p65, %p66
      %p68 = scmp.ne.s32.totalorder %s54, %s55
      %p69 = scmp.eq.s32.totalorder %s21, 1
      %p70 = por %p68, %p69
      %p72 = scmp.ne.s32.totalorder %s55, %s71
      %p73 = scmp.eq.s32.totalorder %s21, 0
      %p74 = por %p72, %p73
      %s76 = sadd.s32 %s75, 1
      %p79 = scmp.eq.s32.totalorder %s15, 1
      %p80 = scmp.ne.s32.totalorder %s75, %s77
      %p81 = scmp.eq.s32.totalorder %s15, 0
      %p82 = por %p80, %p81
      %p83 = scmp.ne.s32.totalorder %s75, %s77
      %p84 = scmp.eq.s32.totalorder %s20, 1
      %p85 = por %p83, %p84
      %p86 = scmp.ne.s32.totalorder %s77, %s78
      %p87 = scmp.eq.s32.totalorder %s20, 0
      %p88 = por %p86, %p87
      %p89 = scmp.ne.s32.totalorder %s77, %s78
      %p90 = scmp.eq.s32.totalorder %s21, 1
      %p91 = por %p89, %p90
      %p93 = scmp.ne.s32.totalorder %s78, %s92
      %p94 = scmp.eq.s32.totalorder %s21, 0
      %p95 = por %p93, %p94
      %s97 = sadd.s32 %s96, 1
      %p100 = scmp.eq.s32.totalorder %s15, 1
      %p101 = scmp.ne.s32.totalorder %s96, %s98
      %p102 = scmp.eq.s32.totalorder %s15, 0
      %p103 = por %p101, %p102
      %p104 = scmp.ne.s32.totalorder %s96, %s98
      %p105 = scmp.eq.s32.totalorder %s20, 1
      %p106 = por %p104, %p105
      %p107 = scmp.ne.s32.totalorder %s98, %s99
      %p108 = scmp.eq.s32.totalorder %s20, 0
      %p109 = por %p107, %p108
      %p110 = scmp.ne.s32.totalorder %s98, %s99
      %p111 = scmp.eq.s32.totalorder %s21, 1
      %p112 = por %p110, %p111
      %p114 = scmp.ne.s32.totalorder %s99, %s113
      %p115 = scmp.eq.s32.totalorder %s21, 0
      %p116 = por %p114, %p115
      %s118 = sadd.s32 %s117, 1
      %p121 = scmp.eq.s32.totalorder %s15, 1
      %p122 = scmp.ne.s32.totalorder %s117, %s119
      %p123 = scmp.eq.s32.totalorder %s15, 0
      %p124 = por %p122, %p123
      %p125 = scmp.ne.s32.totalorder %s117, %s119
      %p126 = scmp.eq.s32.totalorder %s20, 1
      %p127 = por %p125, %p126
      %p128 = scmp.ne.s32.totalorder %s119, %s120
      %p129 = scmp.eq.s32.totalorder %s20, 0
      %p130 = por %p128, %p129
      %p131 = scmp.ne.s32.totalorder %s119, %s120
      %p132 = scmp.eq.s32.totalorder %s21, 1
      %p133 = por %p131, %p132
      %p135 = scmp.ne.s32.totalorder %s120, %s134
      %p136 = scmp.eq.s32.totalorder %s21, 0
      %p137 = por %p135, %p136
      %s138 = ssub.s32 %s15, %s22
      %p139 = scmp.eq.s32.totalorder %s138, 0
      %s141 = sadd.s32 %s140, 1
      %s142 = scalar_select %p139, %s140, %s141
      %p145 = pneg %p139
      %p146 = scmp.eq.s32.totalorder %s15, 1
      %p147 = por %p145, %p146
      %p148 = scmp.ne.s32.totalorder %s140, %s143
      %p149 = scmp.eq.s32.totalorder %s15, 0
      %p150 = por %p148, %p149
      %p151 = scmp.ne.s32.totalorder %s140, %s143
      %p152 = scmp.eq.s32.totalorder %s20, 1
      %p153 = por %p151, %p152
      %p154 = scmp.ne.s32.totalorder %s143, %s144
      %p155 = scmp.eq.s32.totalorder %s20, 0
      %p156 = por %p154, %p155
      %p157 = scmp.ne.s32.totalorder %s143, %s144
      %p158 = scmp.eq.s32.totalorder %s21, 1
      %p159 = por %p157, %p158
      %p161 = scmp.ne.s32.totalorder %s144, %s160
      %p162 = scmp.eq.s32.totalorder %s21, 0
      %p163 = por %p161, %p162
      %p164 = scmp.le.s32.totalorder 1, %s15
      %p165 = scmp.lt.s32.totalorder %s15, 3
      %p166 = pnand %p164, %p165
      %p167 = pneg %p166
      // Predicated region
      $region9: #{tpu_custom_call.1} parent=5 // pred_check
        _
      $region10: #{tpu_custom_call.1} parent=5 // pred_check_branch
        %169 = sbr.rel (%p166) target = $region12
      $region11: #{tpu_custom_call.1} parent=5 // pred_region
        %s170 = ssub.s32 %s15, 1
        // Predicated region
        $region13: #{tpu_custom_call.1} parent=11 // pred_check
          %p171 = pneg %p88
        $region14: #{tpu_custom_call.1} parent=11 // pred_check_branch
          %173 = sbr.rel (%p171) target = $region16
        $region15: #{tpu_custom_call.1} parent=11 // pred_region
          %s175 = ssub.s32 512, 512
          %176 = vsyncadd [#allocation3], %s175
          %s177 = sshll.u32 [#allocation2], 4
          %s178 = int_to_ptr.vmem [resolvable:$true] %s177
          %183 = dma.hbm_to_vmem [thread:$0]  %s2, 512, %s178, [#allocation3], 128, 128, 8
        $region16: #{tpu_custom_call.1} parent=11 // pred_fallthru
          _
        // Predicated region
        $region17: #{tpu_custom_call.1} parent=11 // pred_check
          %p184 = pneg %p109
        $region18: #{tpu_custom_call.1} parent=11 // pred_check_branch
          %186 = sbr.rel (%p184) target = $region20
        $region19: #{tpu_custom_call.1} parent=11 // pred_region
          _
        $region20: #{tpu_custom_call.1} parent=11 // pred_fallthru
          _
        // Predicated region
        $region21: #{tpu_custom_call.1} parent=11 // pred_check
          %p187 = pneg %p130
        $region22: #{tpu_custom_call.1} parent=11 // pred_check_branch
          %189 = sbr.rel (%p187) target = $region24
        $region23: #{tpu_custom_call.1} parent=11 // pred_region
          _
        $region24: #{tpu_custom_call.1} parent=11 // pred_fallthru
          _
      $region12: #{tpu_custom_call.1} parent=5 // pred_fallthru
        _
      %p190 = scmp.lt.s32.totalorder %s15, 2
      // Predicated region
      $region25: #{tpu_custom_call.1} parent=5 // pred_check
        %p191 = pneg %p190
      $region26: #{tpu_custom_call.1} parent=5 // pred_check_branch
        %193 = sbr.rel (%p191) target = $region28
      $region27: #{tpu_custom_call.1} parent=5 // pred_region
        // Predicated region
        $region29: #{tpu_custom_call.1} parent=27 // pred_check
          %p194 = pneg %p35
        $region30: #{tpu_custom_call.1} parent=27 // pred_check_branch
          %196 = sbr.rel (%p194) target = $region32
        $region31: #{tpu_custom_call.1} parent=27 // pred_region
          %p197 = scmp.lt.s32.totalorder %s15, 1
          %s198 = scalar_select %p197, %s15, 1
          %s199 = smul.addr %s198, 8
          %s200 = scalar_lea.vmem %s0, %s199
        $region32: #{tpu_custom_call.1} parent=27 // pred_fallthru
          _
        // Predicated region
        $region33: #{tpu_custom_call.1} parent=27 // pred_check
          %p201 = pneg %p61
        $region34: #{tpu_custom_call.1} parent=27 // pred_check_branch
          %203 = sbr.rel (%p201) target = $region36
        $region35: #{tpu_custom_call.1} parent=27 // pred_region
          %p204 = scmp.lt.s32.totalorder %s15, 1
          %s205 = scalar_select %p204, %s15, 1
          %s206 = smul.addr %s205, 8
          %s207 = scalar_lea.vmem %s1, %s206
        $region36: #{tpu_custom_call.1} parent=27 // pred_fallthru
          _
      $region28: #{tpu_custom_call.1} parent=5 // pred_fallthru
        _
      %p208 = scmp.le.s32.totalorder 1, %s15
      %p209 = scmp.lt.s32.totalorder %s15, 3
      %p210 = pnand %p208, %p209
      %p211 = pneg %p210
      // Predicated region
      $region37: #{tpu_custom_call.1} parent=5 // pred_check
        _
      $region38: #{tpu_custom_call.1} parent=5 // pred_check_branch
        %213 = sbr.rel (%p210) target = $region40
      $region39: #{tpu_custom_call.1} parent=5 // pred_region
        %s214 = ssub.s32 %s15, 1
        // Predicated region
        $region41: #{tpu_custom_call.1} parent=39 // pred_check
          %p215 = pneg %p88
        $region42: #{tpu_custom_call.1} parent=39 // pred_check_branch
          %217 = sbr.rel (%p215) target = $region44
        $region43: #{tpu_custom_call.1} parent=39 // pred_region
          %218 = dma.done [#allocation3], 512
        $region44: #{tpu_custom_call.1} parent=39 // pred_fallthru
          _
        %p219 = scmp.lt.s32.totalorder %s20, 1
        %s220 = scalar_select %p219, %s20, 1
        %s221 = smul.addr %s220, 8
        %s222 = scalar_lea.vmem %s0, %s221
        %p223 = pneg %p41
        %p224 = pneg %p38
        %p225 = scmp.lt.s32.totalorder %s20, 1
        %s226 = scalar_select %p225, %s20, 1
        %s227 = smul.addr %s226, 8
        %s228 = scalar_lea.vmem %s1, %s227
        %p229 = pneg %p67
        %p230 = pneg %p64
        %p231 = pneg %p88
        %p232 = pneg %p85
        %p233 = pneg %p109
        %p234 = pneg %p106
        %p235 = pneg %p130
        %p236 = pneg %p127
        %p237 = pneg %p156
        %p238 = pneg %p153
        %s239 = sand.u32 %s143, 1
        %s240 = scalar_lea.sflag [#allocation4], %s239
        %s241 = sand.u32 %s143, 1
        %s242 = smul.addr %s241, 8
        %s243 = scalar_lea.vmem [#allocation5], %s242
        %p244 = scmp.lt.s32.totalorder %s20, 1
        %s245 = scalar_select %p244, %s20, 1
        %s246 = smul.addr %s245, 8
        %s247 = scalar_lea.vmem %s0, %s246
        %p248 = scmp.lt.s32.totalorder %s20, 1
        %s249 = scalar_select %p248, %s20, 1
        %s250 = smul.addr %s249, 8
        %s251 = scalar_lea.vmem %s1, %s250
        %v252 = vld [vmem:[%s247] sm:$0xff]
        %vm253 = vcmp.lt.f32.partialorder %v252, 0.0
        %v254 = vceil.f32 %v252
        %v255 = vfloor.f32 %v252
        %v256 = vsel %vm253, %v254, %v255
        %v257 = vld [vmem:[%s251] sm:$0xff]
        %v258 = vlaneseq
        %v259 = vand.u32 %v258, 127
        %v260 = vsub.s32 %v259, 1
        %261 = vset.pattern.permute.xlu0 0
        %262 = vperm.xlu0 %261, %v257
        %v263 = vpop.permute.xlu0 %262
        %vm264 = vcmp.eq.s32.totalorder %v263, %v260
        %v265 = vsel %vm264, 1, 0
        %v266 = vcvt.s32.f32 %v265
        %v267 = vld [vmem:[#allocation2] sm:$0xff]
        %v268 = vld [vmem:[#allocation2 + $0x8] sm:$0xff]
        %v269 = vld [vmem:[#allocation2 + $0x10] sm:$0xff]
        %v270 = vld [vmem:[#allocation2 + $0x18] sm:$0xff]
        %vm271 = vcmask 261120
        %v273 = vsel %vm271, %v266, 0
        %275 = vmatprep.subr.mxu0 0.0
        %276 = vmatpush1.msra.mxu0 0.0
        %277 = vmatprep.subr.mxu0 0.0
        %278 = vmatpush1.msra.mxu0 0.0
        %279 = vmatprep.subr.mxu0 0.0
        %280 = vmatpush1.msra.mxu0 0.0
        %281 = vmatprep.subr.mxu0 0.0
        %282 = vmatpush1.msra.mxu0 0.0
        %283 = vmatprep.subr.mxu0 0.0
        %284 = vmatpush1.msra.mxu0 0.0
        %285 = vmatprep.subr.mxu0 0.0
        %286 = vmatpush1.msra.mxu0 0.0
        %287 = vmatprep.subr.mxu0 0.0
        %288 = vmatpush1.msra.mxu0 0.0
        %289 = vmatprep.subr.mxu0 0.0
        %290 = vmatpush1.msra.mxu0 0.0
        %291 = vmatprep.subr.mxu0 0.0
        %292 = vmatpush1.msra.mxu0 0.0
        %293 = vmatprep.subr.mxu0 0.0
        %294 = vmatpush1.msra.mxu0 0.0
        %295 = vmatprep.subr.mxu0 0.0
        %296 = vmatpush1.msra.mxu0 0.0
        %297 = vmatprep.subr.mxu0 0.0
        %298 = vmatpush1.msra.mxu0 0.0
        %299 = vmatprep.subr.mxu0 0.0
        %300 = vmatpush1.msra.mxu0 %v270
        %301 = vmatprep.subr.mxu0 0.0
        %302 = vmatpush1.msra.mxu0 %v269
        %303 = vmatprep.subr.mxu0 0.0
        %304 = vmatpush1.msra.mxu0 %v268
        %305 = vmatprep.subr.mxu0 0.0
        %306 = vmatpush1.msra.mxu0 %v267
        %307 = vmatprep.subr.mxu0 0.0
        %308 = vmatpush2.msra.mxu0 0.0
        %309 = vmatprep.subr.mxu0 0.0
        %310 = vmatpush2.msra.mxu0 0.0
        %311 = vmatprep.subr.mxu0 0.0
        %312 = vmatpush2.msra.mxu0 0.0
        %313 = vmatprep.subr.mxu0 0.0
        %314 = vmatpush2.msra.mxu0 0.0
        %315 = vmatprep.subr.mxu0 0.0
        %316 = vmatpush2.msra.mxu0 0.0
        %317 = vmatprep.subr.mxu0 0.0
        %318 = vmatpush2.msra.mxu0 0.0
        %319 = vmatprep.subr.mxu0 0.0
        %320 = vmatpush2.msra.mxu0 0.0
        %321 = vmatprep.subr.mxu0 0.0
        %322 = vmatpush2.msra.mxu0 0.0
        %323 = vmatprep.subr.mxu0 0.0
        %324 = vmatpush2.msra.mxu0 0.0
        %325 = vmatprep.subr.mxu0 0.0
        %326 = vmatpush2.msra.mxu0 0.0
        %327 = vmatprep.subr.mxu0 0.0
        %328 = vmatpush2.msra.mxu0 0.0
        %329 = vmatprep.subr.mxu0 0.0
        %330 = vmatpush2.msra.mxu0 0.0
        %331 = vmatprep.subr.mxu0 0.0
        %332 = vmatpush2.msra.mxu0 0.0
        %333 = vmatprep.subr.mxu0 0.0
        %334 = vmatpush2.msra.mxu0 0.0
        %335 = vmatprep.subr.mxu0 0.0
        %336 = vmatpush2.msra.mxu0 0.0
        %337 = vmatprep.subr.mxu0 0.0
        %338 = vmatpush2.msra.mxu0 0.0
        %339 = vmatprep.mubr.f32.mxu0 0.0
        %340 = vmatmul.mubr.f32.gmra.mxu0 %v273
        %v341 = vpop.f32.mrf.mxu0
        %v342 = vadd.f32 0.0, %v341
        %v343 = vpop.f32.mrf.mxu0
        %344 = vdwg.mxu0
        %v345 = vadd.f32 %v256, %v342
        %346 = vadd.xlane.f32.xlu0 %v345
        %v347 = vpop.xlane.xlu0 %346
        %v348 = vmul.f32 %v347, 0.0078125
        %v349 = vsub.f32 %v345, %v348
        %v350 = vmul.f32 %v349, %v349
        %351 = vadd.xlane.f32.xlu0 %v350
        %v352 = vpop.xlane.xlu0 %351
        %v353 = vmul.f32 %v352, 0.0078125
        %v354 = vadd.f32 %v353, 1e-12
        %v355 = vrsqrt.pop %v354
        %v356 = vmul.f32 %v349, %v355
        %v357 = vld [vmem:[%s3] sm:$0x1]
        %v359 = vlaneseq
        %v360 = vshrl.u32 %v359, 7
        %v361 = vsub.s32 0, %v360
        %v362 = vrot.slane %v357, %v361
        %v364 = vmul.f32 %v362, %v356
        %v365 = vld [vmem:[%s4] sm:$0x1]
        %v367 = vlaneseq
        %v368 = vshrl.u32 %v367, 7
        %v369 = vsub.s32 0, %v368
        %v370 = vrot.slane %v365, %v369
        %v372 = vadd.f32 %v364, %v370
        %373 = vst [vmem:[%s243] sm:$0xff] %v372
        %s374 = sand.u32 %s143, 1
        %s375 = scalar_lea.sflag [#allocation4], %s374
        %s376 = sand.u32 %s143, 1
        %s377 = smul.addr %s376, 8
        %s378 = scalar_lea.vmem [#allocation5], %s377
        // Predicated region
        $region45: #{tpu_custom_call.1} parent=39 // pred_check
          %p379 = pneg %p153
        $region46: #{tpu_custom_call.1} parent=39 // pred_check_branch
          %381 = sbr.rel (%p379) target = $region48
        $region47: #{tpu_custom_call.1} parent=39 // pred_region
          %s383 = ssub.s32 128, 128
          %384 = vsyncadd %s375, %s383
          %s385 = smul.addr %s20, 128
          %s386 = scalar_lea.hbm %s5, %s385
          %s388 = sshll.u32 %s378, 4
          %s389 = int_to_ptr.vmem [resolvable:$true] %s388
          %391 = dma.vmem_to_hbm [thread:$0]  %s389, 128, %s386, %s375
        $region48: #{tpu_custom_call.1} parent=39 // pred_fallthru
          _
      $region40: #{tpu_custom_call.1} parent=5 // pred_fallthru
        _
      %p392 = scmp.le.s32.totalorder 2, %s15
      // Predicated region
      $region49: #{tpu_custom_call.1} parent=5 // pred_check
        %p393 = pneg %p392
      $region50: #{tpu_custom_call.1} parent=5 // pred_check_branch
        %395 = sbr.rel (%p393) target = $region52
      $region51: #{tpu_custom_call.1} parent=5 // pred_region
        %s396 = ssub.s32 %s15, 2
        // Predicated region
        $region53: #{tpu_custom_call.1} parent=51 // pred_check
          %p397 = pneg %p159
        $region54: #{tpu_custom_call.1} parent=51 // pred_check_branch
          %399 = sbr.rel (%p397) target = $region56
        $region55: #{tpu_custom_call.1} parent=51 // pred_region
          %s400 = sand.u32 %s144, 1
          %s401 = scalar_lea.sflag [#allocation4], %s400
          %s402 = sand.u32 %s144, 1
          %s403 = smul.addr %s402, 8
          %s404 = scalar_lea.vmem [#allocation5], %s403
          %405 = dma.done %s401, 128
        $region56: #{tpu_custom_call.1} parent=51 // pred_fallthru
          _
      $region52: #{tpu_custom_call.1} parent=5 // pred_fallthru
        _
    $region6: #{tpu_custom_call.1} parent=1 // loop_footer
      %s19 = sadd.s32 1, %s15
    $region7: #{tpu_custom_call.1} parent=1 // loop_footer_branch
      %14 = sbr.rel target = $region3
    $region8: #{tpu_custom_call.1} parent=1 // loop_exit
      _
    %406 = vsyncpa [#allocation3], 1
    %s407 = scalar_lea.sflag [#allocation3], 1
    %408 = vsyncpa %s407, 1
    %409 = vsyncpa [#allocation4], 1
    %s410 = scalar_lea.sflag [#allocation4], 1
    %411 = vsyncpa %s410, 1

</llo_original>
